<compile_context>
chip_gen: v7x
topology: tpu7x:2x2x1
jax: 0.10.0
libtpu: 0.0.40
codegen_flags: <defaults>
</compile_context>

<pallas_src>
import jax
import jax.numpy as jnp
from jax.experimental import pallas as pl
from jax.experimental.pallas import tpu as pltpu


def critic_kernel(s_ref, a_ref, w1s_ref, w1a_ref, b1_ref, w2_ref, b2_ref,
                  w3_ref, b3_ref, q_ref):
    wdt = w1s_ref.dtype

    # fc1: split-weight matmul (== concat([state, action], 1) @ W1) + bias + ReLU.
    h1 = jnp.dot(s_ref[...].astype(wdt), w1s_ref[...],
                 preferred_element_type=jnp.float32)
    h1 = h1 + jnp.dot(a_ref[...].astype(wdt), w1a_ref[...],
                      preferred_element_type=jnp.float32)
    h1 = jnp.maximum(h1 + b1_ref[...], 0.0)          # bias + ReLU in f32 (VPU)

    # fc2 + ReLU.
    h2 = jnp.dot(h1.astype(wdt), w2_ref[...], preferred_element_type=jnp.float32)
    h2 = jnp.maximum(h2 + b2_ref[...], 0.0)           # bias + ReLU in f32 (VPU)

    # q1 head: output width 1 -> VPU multiply + lane reduction (avoids a degenerate
    # (fc2, 1) MXU matmul).  w3 is a (1, fc2_dims) row; b3 is an SMEM scalar.
    w3_row = w3_ref[...].astype(jnp.float32)          # (1, fc2_dims)
    q = jnp.sum(h2 * w3_row, axis=-1, keepdims=True) + b3_ref[0]
    q_ref[...] = q.astype(q_ref.dtype)


def critic_forward(state, action, params, *, block_b=512):
    """Q(s, a) forward pass.  `params` = (w1s, w1a, b1, w2, b2, w3, b3)."""
    w1s, w1a, b1, w2, b2, w3, b3 = params
    state = state.astype(jnp.float32)
    action = action.astype(jnp.float32)

    B, in_dims = state.shape
    n_actions = action.shape[1]
    fc1_dims = w1s.shape[1]
    fc2_dims = w2.shape[1]

    # Batch tile: block_b=512 keeps per-tile activations (~0.8 MB f32) far below the
    # scoped-VMEM default on every generation (incl. v7x's 64 MiB physical VMEM);
    # raise block_b (and vmem_limit_bytes) only for very large batches.
    tb = B if B < block_b else block_b
    grid = (pl.cdiv(B, tb),)

    batch_spec = lambda cols: pl.BlockSpec((tb, cols), lambda i: (i, 0))
    resident = lambda shape: pl.BlockSpec(shape, lambda i: (0, 0))

    return pl.pallas_call(
        critic_kernel,
        out_shape=jax.ShapeDtypeStruct((B, 1), jnp.float32),
        grid=grid,
        in_specs=[
            batch_spec(in_dims),                               # state  (batch-tiled)
            batch_spec(n_actions),                             # action (batch-tiled)
            resident((in_dims, fc1_dims)),                     # w1s    (VMEM-resident)
            resident((n_actions, fc1_dims)),                   # w1a
            resident((1, fc1_dims)),                           # b1
            resident((fc1_dims, fc2_dims)),                    # w2
            resident((1, fc2_dims)),                           # b2
            resident((1, fc2_dims)),                           # w3 (stored as a row)
            pl.BlockSpec(memory_space=pltpu.MemorySpace.SMEM), # b3 scalar
        ],
        out_specs=batch_spec(1),
        compiler_params=pltpu.CompilerParams(
            dimension_semantics=("parallel",),
        ),
    )(state, action, w1s, w1a, b1, w2, b2, w3, b3)


def init_params(key, input_dims, n_actions, fc1_dims=256, fc2_dims=128,
                weight_dtype=jnp.bfloat16):
    """PyTorch nn.Linear-style init: U(-1/sqrt(fan_in), 1/sqrt(fan_in)) for W and b.

    fc1's weight is split into a state part and an action part (same fan_in bound as
    the concatenated layer -> mathematically identical to nn.Linear on concat input).
    Weights are cast to `weight_dtype` (bf16 by default); biases stay f32.
    """
    d_in = input_dims + n_actions
    keys = jax.random.split(key, 7)

    def u(k, shape, fan_in):
        bound = 1.0 / jnp.sqrt(jnp.float32(fan_in))
        return jax.random.uniform(k, shape, jnp.float32, -bound, bound)

    w1s = u(keys[0], (input_dims, fc1_dims), d_in)
    w1a = u(keys[1], (n_actions, fc1_dims), d_in)
    b1 = u(keys[2], (1, fc1_dims), d_in)
    w2 = u(keys[3], (fc1_dims, fc2_dims), fc1_dims)
    b2 = u(keys[4], (1, fc2_dims), fc1_dims)
    w3 = u(keys[5], (1, fc2_dims), fc2_dims)   # q1 weight stored as a row (VPU head)
    b3 = u(keys[6], (1,), fc2_dims)            # q1 bias scalar (lives in SMEM)

    cast = lambda w: w.astype(weight_dtype)
    return (cast(w1s), cast(w1a), b1, cast(w2), b2, cast(w3), b3)


def reference_forward(state, action, params):
    """Plain-JAX reference using the same precision policy as the kernel."""
    w1s, w1a, b1, w2, b2, w3, b3 = params
    wdt = w1s.dtype
    h1 = (jnp.dot(state.astype(wdt), w1s, preferred_element_type=jnp.float32)
          + jnp.dot(action.astype(wdt), w1a, preferred_element_type=jnp.float32))
    h1 = jnp.maximum(h1 + b1, 0.0)
    h2 = jnp.dot(h1.astype(wdt), w2, preferred_element_type=jnp.float32)
    h2 = jnp.maximum(h2 + b2, 0.0)
    return jnp.sum(h2 * w3.astype(jnp.float32), axis=-1, keepdims=True) + b3[0]


if __name__ == "__main__":
    key = jax.random.PRNGKey(0)
    k_params, k_state, k_action = jax.random.split(key, 3)

    batch = 2
    input_dims = 16   # state feature dim (module's input_dims[0])
    n_actions = 4

    params = init_params(k_params, input_dims, n_actions)
    state = jax.random.normal(k_state, (batch, input_dims), jnp.float32)
    action = jax.random.normal(k_action, (batch, n_actions), jnp.float32)

    q = jax.block_until_ready(critic_forward(state, action, params))
    q_ref = reference_forward(state, action, params)
    assert q.shape == (batch, 1)
    assert jnp.allclose(q, q_ref, atol=2e-3, rtol=2e-3)

    # Larger batch to exercise the batch grid / parallel axis / partial tiles.
    B2 = 1024
    kb_s, kb_a = jax.random.split(jax.random.PRNGKey(1), 2)
    state2 = jax.random.normal(kb_s, (B2, input_dims), jnp.float32)
    action2 = jax.random.normal(kb_a, (B2, n_actions), jnp.float32)
    q2 = jax.block_until_ready(critic_forward(state2, action2, params))
    q2_ref = reference_forward(state2, action2, params)
    assert q2.shape == (B2, 1)
    assert jnp.allclose(q2, q2_ref, atol=2e-3, rtol=2e-3)

    print("KERNEL_OK")
</pallas_src>

<mosaic_0001>
module attributes {stable_mosaic.version = 11 : i64} {
  func.func @critic_kernel(%arg0: i32, %arg1: memref<2x16xf32, #tpu.memory_space<vmem>>, %arg2: memref<2x4xf32, #tpu.memory_space<vmem>>, %arg3: memref<16x256xbf16, #tpu.memory_space<vmem>>, %arg4: memref<4x256xbf16, #tpu.memory_space<vmem>>, %arg5: memref<1x256xf32, #tpu.memory_space<vmem>>, %arg6: memref<256x128xbf16, #tpu.memory_space<vmem>>, %arg7: memref<1x128xf32, #tpu.memory_space<vmem>>, %arg8: memref<1x128xbf16, #tpu.memory_space<vmem>>, %arg9: memref<1xf32, #tpu.memory_space<smem>>, %arg10: memref<2x1xf32, #tpu.memory_space<vmem>>) attributes {dimension_semantics = [#tpu.dimension_semantics<parallel>], iteration_bounds = array<i64: 1>, scalar_prefetch = 0 : i64, scratch_operands = 0 : i64, tpu.core_type = #tpu.core_type<tc>, window_params = [{transform_indices = @transform_0, window_bounds = array<i64: 2, 16>}, {transform_indices = @transform_1, window_bounds = array<i64: 2, 4>}, {pipeline_mode = #tpu.pipeline_mode<synchronous>, transform_indices = @transform_2, window_bounds = array<i64: 16, 256>}, {pipeline_mode = #tpu.pipeline_mode<synchronous>, transform_indices = @transform_3, window_bounds = array<i64: 4, 256>}, {pipeline_mode = #tpu.pipeline_mode<synchronous>, transform_indices = @transform_4, window_bounds = array<i64: 1, 256>}, {pipeline_mode = #tpu.pipeline_mode<synchronous>, transform_indices = @transform_5, window_bounds = array<i64: 256, 128>}, {pipeline_mode = #tpu.pipeline_mode<synchronous>, transform_indices = @transform_6, window_bounds = array<i64: 1, 128>}, {pipeline_mode = #tpu.pipeline_mode<synchronous>, transform_indices = @transform_7, window_bounds = array<i64: 1, 128>}, {transform_indices = @transform_8, window_bounds = array<i64: 1>}, {transform_indices = @transform_9, window_bounds = array<i64: 2, 1>}]} {
    %c0 = arith.constant 0 : index
    %c0_0 = arith.constant 0 : index
    %0 = vector.load %arg1[%c0, %c0_0] : memref<2x16xf32, #tpu.memory_space<vmem>>, vector<2x16xf32>
    %1 = arith.truncf %0 : vector<2x16xf32> to vector<2x16xbf16>
    %c0_1 = arith.constant 0 : index
    %c0_2 = arith.constant 0 : index
    %2 = vector.load %arg3[%c0_1, %c0_2] : memref<16x256xbf16, #tpu.memory_space<vmem>>, vector<16x256xbf16>
    %cst = arith.constant dense<0.000000e+00> : vector<2x256xf32>
    %3 = tpu.matmul %1, %2, %cst {dimension_numbers = #tpu.dot_dimension_numbers<[1], [0], [0], [1], [0, 0, 1, 1], [], []>} : vector<2x16xbf16>, vector<16x256xbf16>, vector<2x256xf32> -> vector<2x256xf32>
    %c0_3 = arith.constant 0 : index
    %c0_4 = arith.constant 0 : index
    %4 = vector.load %arg2[%c0_3, %c0_4] : memref<2x4xf32, #tpu.memory_space<vmem>>, vector<2x4xf32>
    %5 = arith.truncf %4 : vector<2x4xf32> to vector<2x4xbf16>
    %c0_5 = arith.constant 0 : index
    %c0_6 = arith.constant 0 : index
    %6 = vector.load %arg4[%c0_5, %c0_6] : memref<4x256xbf16, #tpu.memory_space<vmem>>, vector<4x256xbf16>
    %cst_7 = arith.constant dense<0.000000e+00> : vector<2x256xf32>
    %7 = tpu.matmul %5, %6, %cst_7 {dimension_numbers = #tpu.dot_dimension_numbers<[1], [0], [0], [1], [0, 0, 1, 1], [], []>} : vector<2x4xbf16>, vector<4x256xbf16>, vector<2x256xf32> -> vector<2x256xf32>
    %8 = arith.addf %3, %7 : vector<2x256xf32>
    %c0_8 = arith.constant 0 : index
    %c0_9 = arith.constant 0 : index
    %9 = vector.load %arg5[%c0_8, %c0_9] : memref<1x256xf32, #tpu.memory_space<vmem>>, vector<1x256xf32>
    %10 = vector.broadcast %9 : vector<1x256xf32> to vector<2x256xf32>
    %11 = arith.addf %8, %10 : vector<2x256xf32>
    %cst_10 = arith.constant 0.000000e+00 : f32
    %12 = vector.broadcast %cst_10 : f32 to vector<2x256xf32>
    %13 = arith.maximumf %11, %12 : vector<2x256xf32>
    %14 = arith.truncf %13 : vector<2x256xf32> to vector<2x256xbf16>
    %c0_11 = arith.constant 0 : index
    %c0_12 = arith.constant 0 : index
    %15 = vector.load %arg6[%c0_11, %c0_12] : memref<256x128xbf16, #tpu.memory_space<vmem>>, vector<256x128xbf16>
    %cst_13 = arith.constant dense<0.000000e+00> : vector<2x128xf32>
    %16 = tpu.matmul %14, %15, %cst_13 {dimension_numbers = #tpu.dot_dimension_numbers<[1], [0], [0], [1], [0, 0, 1, 1], [], []>} : vector<2x256xbf16>, vector<256x128xbf16>, vector<2x128xf32> -> vector<2x128xf32>
    %c0_14 = arith.constant 0 : index
    %c0_15 = arith.constant 0 : index
    %17 = vector.load %arg7[%c0_14, %c0_15] : memref<1x128xf32, #tpu.memory_space<vmem>>, vector<1x128xf32>
    %18 = vector.broadcast %17 : vector<1x128xf32> to vector<2x128xf32>
    %19 = arith.addf %16, %18 : vector<2x128xf32>
    %cst_16 = arith.constant 0.000000e+00 : f32
    %20 = vector.broadcast %cst_16 : f32 to vector<2x128xf32>
    %21 = arith.maximumf %19, %20 : vector<2x128xf32>
    %c0_17 = arith.constant 0 : index
    %c0_18 = arith.constant 0 : index
    %22 = vector.load %arg8[%c0_17, %c0_18] : memref<1x128xbf16, #tpu.memory_space<vmem>>, vector<1x128xbf16>
    %23 = arith.extf %22 : vector<1x128xbf16> to vector<1x128xf32>
    %24 = vector.broadcast %23 : vector<1x128xf32> to vector<2x128xf32>
    %25 = arith.mulf %21, %24 : vector<2x128xf32>
    %cst_19 = arith.constant dense<0.000000e+00> : vector<2xf32>
    %26 = vector.multi_reduction <add>, %25, %cst_19 [1] : vector<2x128xf32> to vector<2xf32>
    %27 = vector.shape_cast %26 : vector<2xf32> to vector<2x1xf32>
    %c0_20 = arith.constant 0 : index
    %28 = memref.load %arg9[%c0_20] : memref<1xf32, #tpu.memory_space<smem>>
    %29 = vector.broadcast %28 : f32 to vector<2x1xf32>
    %30 = arith.addf %27, %29 : vector<2x1xf32>
    %c0_21 = arith.constant 0 : index
    %c0_22 = arith.constant 0 : index
    %31 = vector.load %arg10[%c0_21, %c0_22] : memref<2x1xf32, #tpu.memory_space<vmem>>, vector<2x1xf32>
    tpu.vector_store %arg10[%c0_21, %c0_22], %30 {strides = array<i32>} : memref<2x1xf32, #tpu.memory_space<vmem>>, vector<2x1xf32>,
    return
  }
  func.func @transform_0(%arg0: i32) -> (i32, i32) {
    %c0_i32 = arith.constant 0 : i32
    %c0_i32_0 = arith.constant 0 : i32
    return %arg0, %c0_i32 : i32, i32
  }
  func.func @transform_1(%arg0: i32) -> (i32, i32) {
    %c0_i32 = arith.constant 0 : i32
    %c0_i32_0 = arith.constant 0 : i32
    return %arg0, %c0_i32 : i32, i32
  }
  func.func @transform_2(%arg0: i32) -> (i32, i32) {
    %c0_i32 = arith.constant 0 : i32
    %c0_i32_0 = arith.constant 0 : i32
    %c0_i32_1 = arith.constant 0 : i32
    return %c0_i32, %c0_i32_0 : i32, i32
  }
  func.func @transform_3(%arg0: i32) -> (i32, i32) {
    %c0_i32 = arith.constant 0 : i32
    %c0_i32_0 = arith.constant 0 : i32
    %c0_i32_1 = arith.constant 0 : i32
    return %c0_i32, %c0_i32_0 : i32, i32
  }
  func.func @transform_4(%arg0: i32) -> (i32, i32) {
    %c0_i32 = arith.constant 0 : i32
    %c0_i32_0 = arith.constant 0 : i32
    %c0_i32_1 = arith.constant 0 : i32
    return %c0_i32, %c0_i32_0 : i32, i32
  }
  func.func @transform_5(%arg0: i32) -> (i32, i32) {
    %c0_i32 = arith.constant 0 : i32
    %c0_i32_0 = arith.constant 0 : i32
    %c0_i32_1 = arith.constant 0 : i32
    return %c0_i32, %c0_i32_0 : i32, i32
  }
  func.func @transform_6(%arg0: i32) -> (i32, i32) {
    %c0_i32 = arith.constant 0 : i32
    %c0_i32_0 = arith.constant 0 : i32
    %c0_i32_1 = arith.constant 0 : i32
    return %c0_i32, %c0_i32_0 : i32, i32
  }
  func.func @transform_7(%arg0: i32) -> (i32, i32) {
    %c0_i32 = arith.constant 0 : i32
    %c0_i32_0 = arith.constant 0 : i32
    %c0_i32_1 = arith.constant 0 : i32
    return %c0_i32, %c0_i32_0 : i32, i32
  }
  func.func @transform_8(%arg0: i32) -> i32 {
    %c0_i32 = arith.constant 0 : i32
    %c0_i32_0 = arith.constant 0 : i32
    return %c0_i32 : i32
  }
  func.func @transform_9(%arg0: i32) -> (i32, i32) {
    %c0_i32 = arith.constant 0 : i32
    %c0_i32_0 = arith.constant 0 : i32
    return %arg0, %c0_i32 : i32, i32
  }
}

</mosaic_0001>

<llo_original>
// kernel: tpu_custom_call.1
$region0: #{tpu_custom_call.1}
  #allocation0 [shape = 'u32[]', space=smem, size = 0x4, offset = 0x4, fixed_abs, tag = 'smem constant byte address 0x4 - core index']
  #allocation1 [shape = 'u32[144,128]{1,0:T(1,128)}', space=vmem, size = 0x12000, scoped, tag = 'internal scratch']
  #allocation2 [shape = 'f32[1]{0:T(128)S(6)}', space=smem, size = 0x200, scoped, tag = 'scoped memory for tpu_custom_call.1']
  %s0 = inlined_call_operand.vmem [shape: f32[2,16], index: 0, kind: input, shape index: {}]
  %s1 = inlined_call_operand.hbm [shape: f32[2,4], index: 1, kind: input, shape index: {}]
  %s2 = inlined_call_operand.hbm [shape: bf16[16,256], index: 2, kind: input, shape index: {}]
  %s3 = inlined_call_operand.vmem [shape: bf16[4,256], index: 3, kind: input, shape index: {}]
  %s4 = inlined_call_operand.vmem [shape: f32[1,256], index: 4, kind: input, shape index: {}]
  %s5 = inlined_call_operand.hbm [shape: bf16[256,128], index: 5, kind: input, shape index: {}]
  %s6 = inlined_call_operand.vmem [shape: f32[1,128], index: 6, kind: input, shape index: {}]
  %s7 = inlined_call_operand.vmem [shape: bf16[1,128], index: 7, kind: input, shape index: {}]
  %s8 = inlined_call_operand.<no memory space> [shape: f32[1], index: 8, kind: input, shape index: {}]
  %s9 = inlined_call_operand.vmem [shape: f32[2,1], index: 9, kind: output, shape index: {}]
  %s10 = sld [smem:[#allocation0]]
  $region58: #{tpu_custom_call.1} parent=0
    _
  %s12 = ssub.s32 1, %s10
  %s13 = scalar_select 0, %s12, %s10
  %14 = sst [smem:[#allocation2]] %s8
  $region1: #{tpu_custom_call.1} parent=0
    #allocation3 [shape = 'u8[1024]{0}', space=vmem, size = 0x400, scoped, tag = 'input window, operand 1, single buffered']
    #allocation4 [shape = 's32[1]{0}', space=sflag, size = 0x4, scoped, tag = 'scoped memory for tpu_custom_call.1']
    #allocation5 [shape = 'u8[8192]{0}', space=vmem, size = 0x2000, scoped, tag = 'input window, operand 2, single buffered']
    #allocation6 [shape = 's32[1]{0}', space=sflag, size = 0x4, scoped, tag = 'scoped memory for tpu_custom_call.1']
    #allocation7 [shape = 'u8[65536]{0}', space=vmem, size = 0x10000, scoped, tag = 'input window, operand 5, single buffered']
    %15 = vsyncpa [#allocation4], 0
    %16 = vsyncpa [#allocation6], 0
    // Predicated region
    $region2: #{tpu_custom_call.1} parent=1 // pred_check
      _
    $region3: #{tpu_custom_call.1} parent=1 // pred_check_branch
      %18 = sbr.rel (0) target = $region5
    $region4: #{tpu_custom_call.1} parent=1 // pred_region
      _
    $region5: #{tpu_custom_call.1} parent=1 // pred_fallthru
      _
    // Predicated region
    $region6: #{tpu_custom_call.1} parent=1 // pred_check
      _
    $region7: #{tpu_custom_call.1} parent=1 // pred_check_branch
      %20 = sbr.rel (0) target = $region9
    $region8: #{tpu_custom_call.1} parent=1 // pred_region
      %s22 = ssub.s32 32, 32
      %23 = vsyncadd [#allocation4], %s22
      %s25 = sshll.u32 [#allocation3], 4
      %s26 = int_to_ptr.vmem [resolvable:$true] %s25
      %28 = dma.hbm_to_vmem [thread:$0]  %s1, 32, %s26, [#allocation4]
    $region9: #{tpu_custom_call.1} parent=1 // pred_fallthru
      _
    // Predicated region
    $region10: #{tpu_custom_call.1} parent=1 // pred_check
      _
    $region11: #{tpu_custom_call.1} parent=1 // pred_check_branch
      %30 = sbr.rel (0) target = $region13
    $region12: #{tpu_custom_call.1} parent=1 // pred_region
      %s32 = ssub.s32 256, 256
      %33 = vsyncadd [#allocation6], %s32
      %s34 = sshll.u32 [#allocation5], 4
      %s35 = int_to_ptr.vmem [resolvable:$true] %s34
      %40 = dma.hbm_to_vmem [thread:$0]  %s2, 256, %s35, [#allocation6], 128, 128, 8
    $region13: #{tpu_custom_call.1} parent=1 // pred_fallthru
      _
    // Predicated region
    $region14: #{tpu_custom_call.1} parent=1 // pred_check
      _
    $region15: #{tpu_custom_call.1} parent=1 // pred_check_branch
      %42 = sbr.rel (0) target = $region17
    $region16: #{tpu_custom_call.1} parent=1 // pred_region
      _
    $region17: #{tpu_custom_call.1} parent=1 // pred_fallthru
      _
    // Predicated region
    $region18: #{tpu_custom_call.1} parent=1 // pred_check
      _
    $region19: #{tpu_custom_call.1} parent=1 // pred_check_branch
      %44 = sbr.rel (0) target = $region21
    $region20: #{tpu_custom_call.1} parent=1 // pred_region
      _
    $region21: #{tpu_custom_call.1} parent=1 // pred_fallthru
      _
    // Predicated region
    $region22: #{tpu_custom_call.1} parent=1 // pred_check
      _
    $region23: #{tpu_custom_call.1} parent=1 // pred_check_branch
      %46 = sbr.rel (0) target = $region25
    $region24: #{tpu_custom_call.1} parent=1 // pred_region
      %s48 = ssub.s32 2048, 2048
      %49 = vsyncadd [#allocation6], %s48
      %s50 = sshll.u32 [#allocation7], 4
      %s51 = int_to_ptr.vmem [resolvable:$true] %s50
      %56 = dma.hbm_to_vmem [thread:$0]  %s5, 2048, %s51, [#allocation6], 64, 64, 4
    $region25: #{tpu_custom_call.1} parent=1 // pred_fallthru
      _
    // Predicated region
    $region26: #{tpu_custom_call.1} parent=1 // pred_check
      _
    $region27: #{tpu_custom_call.1} parent=1 // pred_check_branch
      %58 = sbr.rel (0) target = $region29
    $region28: #{tpu_custom_call.1} parent=1 // pred_region
      _
    $region29: #{tpu_custom_call.1} parent=1 // pred_fallthru
      _
    // Predicated region
    $region30: #{tpu_custom_call.1} parent=1 // pred_check
      _
    $region31: #{tpu_custom_call.1} parent=1 // pred_check_branch
      %60 = sbr.rel (0) target = $region33
    $region32: #{tpu_custom_call.1} parent=1 // pred_region
      _
    $region33: #{tpu_custom_call.1} parent=1 // pred_fallthru
      _
    // Predicated region
    $region34: #{tpu_custom_call.1} parent=1 // pred_check
      _
    $region35: #{tpu_custom_call.1} parent=1 // pred_check_branch
      %62 = sbr.rel (0) target = $region37
    $region36: #{tpu_custom_call.1} parent=1 // pred_region
      _
    $region37: #{tpu_custom_call.1} parent=1 // pred_fallthru
      _
    // Predicated region
    $region38: #{tpu_custom_call.1} parent=1 // pred_check
      _
    $region39: #{tpu_custom_call.1} parent=1 // pred_check_branch
      %64 = sbr.rel (0) target = $region41
    $region40: #{tpu_custom_call.1} parent=1 // pred_region
      %65 = dma.done [#allocation4], 32
    $region41: #{tpu_custom_call.1} parent=1 // pred_fallthru
      _
    // Predicated region
    $region42: #{tpu_custom_call.1} parent=1 // pred_check
      _
    $region43: #{tpu_custom_call.1} parent=1 // pred_check_branch
      %67 = sbr.rel (0) target = $region45
    $region44: #{tpu_custom_call.1} parent=1 // pred_region
      %68 = dma.done [#allocation6], 256
    $region45: #{tpu_custom_call.1} parent=1 // pred_fallthru
      _
    // Predicated region
    $region46: #{tpu_custom_call.1} parent=1 // pred_check
      _
    $region47: #{tpu_custom_call.1} parent=1 // pred_check_branch
      %70 = sbr.rel (0) target = $region49
    $region48: #{tpu_custom_call.1} parent=1 // pred_region
      %71 = dma.done [#allocation6], 2048
    $region49: #{tpu_custom_call.1} parent=1 // pred_fallthru
      _
    %v73 = vld [vmem:[%s0] sm:$0x3]
    %v74 = vpack.c.bf16 %v73, %v73
    %v75 = vld [vmem:[#allocation5] sm:$0xff]
    %v76 = vld [vmem:[#allocation5 + $0x8] sm:$0xff]
    %v77 = vld [vmem:[#allocation3] sm:$0x3]
    %v78 = vpack.c.bf16 %v77, %v77
    %v79 = vld [vmem:[%s3] sm:$0xf]
    %v82 = vunpack.c.l.s4 1983009808
    %v83 = vunpack.c.0.s8 %v82
    %v84 = vlaneseq
    %v85 = vshrl.u32 %v84, 7
    %v86 = vsub.s32 %v83, %v85
    %v87 = vrot.slane %v79, %v86
    %v88 = vcombine.high %v87, %v87
    %vm89 = vcmask 31744
    %v91 = vsel %vm89, %v78, 0
    %vm93 = vcmask 1041408
    %v95 = vsel %vm93, %v87, 0
    %v98 = vsel %vm93, %v88, 0
    %100 = vmatprep.subr.bf16.mxu0 %v98
    %101 = vmatpush1.bf16.msra.mxu0 %v95
    %102 = vmatprep.subr.bf16.mxu0 0
    %103 = vmatpush1.bf16.msra.mxu0 0
    %104 = vmatprep.subr.bf16.mxu0 0
    %105 = vmatpush1.bf16.msra.mxu0 0
    %106 = vmatprep.subr.bf16.mxu0 0
    %107 = vmatpush1.bf16.msra.mxu0 0
    %108 = vmatprep.subr.bf16.mxu0 0
    %109 = vmatpush1.bf16.msra.mxu0 0
    %110 = vmatprep.subr.bf16.mxu0 0
    %111 = vmatpush1.bf16.msra.mxu0 0
    %112 = vmatprep.subr.bf16.mxu0 0
    %113 = vmatpush1.bf16.msra.mxu0 0
    %114 = vmatprep.subr.bf16.mxu0 0
    %115 = vmatpush1.bf16.msra.mxu0 0
    %116 = vmatprep.subr.bf16.mxu0 0
    %117 = vmatpush1.bf16.msra.mxu0 0
    %118 = vmatprep.subr.bf16.mxu0 0
    %119 = vmatpush1.bf16.msra.mxu0 0
    %120 = vmatprep.subr.bf16.mxu0 0
    %121 = vmatpush1.bf16.msra.mxu0 0
    %122 = vmatprep.subr.bf16.mxu0 0
    %123 = vmatpush1.bf16.msra.mxu0 0
    %124 = vmatprep.subr.bf16.mxu0 0
    %125 = vmatpush1.bf16.msra.mxu0 0
    %126 = vmatprep.subr.bf16.mxu0 0
    %127 = vmatpush1.bf16.msra.mxu0 0
    %128 = vmatprep.subr.bf16.mxu0 0
    %129 = vmatpush1.bf16.msra.mxu0 0
    %130 = vmatprep.subr.bf16.mxu0 0
    %131 = vmatpush1.bf16.msra.mxu0 0
    %132 = vmatprep.mubr.bf16.mxu0 0
    %133 = vmatmul.mubr.bf16.gmra.mrb[0].mxu0 %v91
    %v134 = vpop.f32.mrb[0].mxu0
    %v135 = vadd.f32 0.0, %v134
    %v136 = vpop.f32.mrb[0].mxu0
    %v137 = vadd.f32 0.0, %v136
    %v138 = vpop.f32.mrb[0].mxu0
    %v139 = vpop.f32.mrb[0].mxu0
    %140 = vdwg.mxu0
    %v143 = vunpack.c.l.b16 %v75
    %v144 = vunpack.c.h.b16 %v75
    %v145 = vunpack.c.l.b16 %v76
    %v146 = vunpack.c.h.b16 %v76
    %v147 = vpack.c.b16 %v145, %v143
    %v148 = vpack.c.b16 %v146, %v144
    %vm151 = vcmask 130048
    %v153 = vsel %vm151, %v74, 0
    %155 = vmatprep.subr.bf16.mxu0 %v148
    %156 = vmatpush1.bf16.msra.mxu0 %v147
    %157 = vmatprep.subr.bf16.mxu0 0
    %158 = vmatpush1.bf16.msra.mxu0 0
    %159 = vmatprep.subr.bf16.mxu0 0
    %160 = vmatpush1.bf16.msra.mxu0 0
    %161 = vmatprep.subr.bf16.mxu0 0
    %162 = vmatpush1.bf16.msra.mxu0 0
    %163 = vmatprep.subr.bf16.mxu0 0
    %164 = vmatpush1.bf16.msra.mxu0 0
    %165 = vmatprep.subr.bf16.mxu0 0
    %166 = vmatpush1.bf16.msra.mxu0 0
    %167 = vmatprep.subr.bf16.mxu0 0
    %168 = vmatpush1.bf16.msra.mxu0 0
    %169 = vmatprep.subr.bf16.mxu0 0
    %170 = vmatpush1.bf16.msra.mxu0 0
    %171 = vmatprep.subr.bf16.mxu0 0
    %172 = vmatpush1.bf16.msra.mxu0 0
    %173 = vmatprep.subr.bf16.mxu0 0
    %174 = vmatpush1.bf16.msra.mxu0 0
    %175 = vmatprep.subr.bf16.mxu0 0
    %176 = vmatpush1.bf16.msra.mxu0 0
    %177 = vmatprep.subr.bf16.mxu0 0
    %178 = vmatpush1.bf16.msra.mxu0 0
    %179 = vmatprep.subr.bf16.mxu0 0
    %180 = vmatpush1.bf16.msra.mxu0 0
    %181 = vmatprep.subr.bf16.mxu0 0
    %182 = vmatpush1.bf16.msra.mxu0 0
    %183 = vmatprep.subr.bf16.mxu0 0
    %184 = vmatpush1.bf16.msra.mxu0 0
    %185 = vmatprep.subr.bf16.mxu0 0
    %186 = vmatpush1.bf16.msra.mxu0 0
    %187 = vmatprep.mubr.bf16.mxu0 0
    %188 = vmatmul.mubr.bf16.gmra.mrb[0].mxu0 %v153
    %v189 = vpop.f32.mrb[0].mxu0
    %v190 = vadd.f32 %v135, %v189
    %v191 = vpop.f32.mrb[0].mxu0
    %v192 = vadd.f32 %v137, %v191
    %v193 = vpop.f32.mrb[0].mxu0
    %v194 = vpop.f32.mrb[0].mxu0
    %195 = vdwg.mxu0
    %v196 = vld [vmem:[%s4] sm:$0x3]
    %v198 = vlaneseq
    %v199 = vshrl.u32 %v198, 7
    %v200 = vsub.s32 0, %v199
    %v201 = vrot.slane %v196, %v200
    %v202 = vlaneseq
    %v203 = vshrl.u32 %v202, 7
    %v204 = vsub.s32 1, %v203
    %v205 = vrot.slane %v196, %v204
    %v208 = vadd.f32 %v190, %v201
    %v209 = vadd.f32 %v192, %v205
    %v210 = vmax.f32 %v208, 0.0
    %v211 = vmax.f32 %v209, 0.0
    %v212 = vpack.c.bf16 %v210, %v210
    %v213 = vpack.c.bf16 %v211, %v211
    %v214 = vld [vmem:[#allocation7] sm:$0xf]
    %v215 = vld [vmem:[#allocation7 + $0x4] sm:$0xf]
    %v216 = vld [vmem:[#allocation7 + $0x8] sm:$0xf]
    %v217 = vld [vmem:[#allocation7 + $0xc] sm:$0xf]
    %v218 = vld [vmem:[#allocation7 + $0x10] sm:$0xf]
    %v219 = vld [vmem:[#allocation7 + $0x14] sm:$0xf]
    %v220 = vld [vmem:[#allocation7 + $0x18] sm:$0xf]
    %v221 = vld [vmem:[#allocation7 + $0x1c] sm:$0xf]
    %v222 = vld [vmem:[#allocation7 + $0x20] sm:$0xf]
    %v223 = vld [vmem:[#allocation7 + $0x24] sm:$0xf]
    %v224 = vld [vmem:[#allocation7 + $0x28] sm:$0xf]
    %v225 = vld [vmem:[#allocation7 + $0x2c] sm:$0xf]
    %v226 = vld [vmem:[#allocation7 + $0x30] sm:$0xf]
    %v227 = vld [vmem:[#allocation7 + $0x34] sm:$0xf]
    %v228 = vld [vmem:[#allocation7 + $0x38] sm:$0xf]
    %v229 = vld [vmem:[#allocation7 + $0x3c] sm:$0xf]
    %v230 = vld [vmem:[#allocation7 + $0x40] sm:$0xf]
    %v231 = vld [vmem:[#allocation7 + $0x44] sm:$0xf]
    %v232 = vld [vmem:[#allocation7 + $0x48] sm:$0xf]
    %v233 = vld [vmem:[#allocation7 + $0x4c] sm:$0xf]
    %v234 = vld [vmem:[#allocation7 + $0x50] sm:$0xf]
    %v235 = vld [vmem:[#allocation7 + $0x54] sm:$0xf]
    %v236 = vld [vmem:[#allocation7 + $0x58] sm:$0xf]
    %v237 = vld [vmem:[#allocation7 + $0x5c] sm:$0xf]
    %v238 = vld [vmem:[#allocation7 + $0x60] sm:$0xf]
    %v239 = vld [vmem:[#allocation7 + $0x64] sm:$0xf]
    %v240 = vld [vmem:[#allocation7 + $0x68] sm:$0xf]
    %v241 = vld [vmem:[#allocation7 + $0x6c] sm:$0xf]
    %v242 = vld [vmem:[#allocation7 + $0x70] sm:$0xf]
    %v243 = vld [vmem:[#allocation7 + $0x74] sm:$0xf]
    %v244 = vld [vmem:[#allocation7 + $0x78] sm:$0xf]
    %v245 = vld [vmem:[#allocation7 + $0x7c] sm:$0xf]
    %v246 = vld [vmem:[%s6] sm:$0x1]
    %v248 = vlaneseq
    %v249 = vshrl.u32 %v248, 7
    %v250 = vsub.s32 0, %v249
    %v251 = vrot.slane %v246, %v250
    %v285 = vunpack.c.l.b16 %v214
    %v286 = vunpack.c.l.b16 %v215
    %v287 = vunpack.c.l.b16 %v216
    %v288 = vunpack.c.l.b16 %v217
    %v289 = vunpack.c.l.b16 %v218
    %v290 = vunpack.c.l.b16 %v219
    %v291 = vunpack.c.l.b16 %v220
    %v292 = vunpack.c.l.b16 %v221
    %v293 = vunpack.c.l.b16 %v222
    %v294 = vunpack.c.l.b16 %v223
    %v295 = vunpack.c.l.b16 %v224
    %v296 = vunpack.c.l.b16 %v225
    %v297 = vunpack.c.l.b16 %v226
    %v298 = vunpack.c.l.b16 %v227
    %v299 = vunpack.c.l.b16 %v228
    %v300 = vunpack.c.l.b16 %v229
    %v301 = vunpack.c.l.b16 %v230
    %v302 = vunpack.c.l.b16 %v231
    %v303 = vunpack.c.l.b16 %v232
    %v304 = vunpack.c.l.b16 %v233
    %v305 = vunpack.c.l.b16 %v234
    %v306 = vunpack.c.l.b16 %v235
    %v307 = vunpack.c.l.b16 %v236
    %v308 = vunpack.c.l.b16 %v237
    %v309 = vunpack.c.l.b16 %v238
    %v310 = vunpack.c.l.b16 %v239
    %v311 = vunpack.c.l.b16 %v240
    %v312 = vunpack.c.l.b16 %v241
    %v313 = vunpack.c.l.b16 %v242
    %v314 = vunpack.c.l.b16 %v243
    %v315 = vunpack.c.l.b16 %v244
    %v316 = vunpack.c.l.b16 %v245
    %v317 = vpack.c.b16 %v286, %v285
    %v318 = vpack.c.b16 %v288, %v287
    %v319 = vpack.c.b16 %v290, %v289
    %v320 = vpack.c.b16 %v292, %v291
    %v321 = vpack.c.b16 %v294, %v293
    %v322 = vpack.c.b16 %v296, %v295
    %v323 = vpack.c.b16 %v298, %v297
    %v324 = vpack.c.b16 %v300, %v299
    %v325 = vpack.c.b16 %v302, %v301
    %v326 = vpack.c.b16 %v304, %v303
    %v327 = vpack.c.b16 %v306, %v305
    %v328 = vpack.c.b16 %v308, %v307
    %v329 = vpack.c.b16 %v310, %v309
    %v330 = vpack.c.b16 %v312, %v311
    %v331 = vpack.c.b16 %v314, %v313
    %v332 = vpack.c.b16 %v316, %v315
    %349 = vmatprep.subr.bf16.mxu0 0
    %350 = vmatpush1.bf16.msra.mxu0 %v317
    %351 = vmatprep.subr.bf16.mxu0 0
    %352 = vmatpush1.bf16.msra.mxu0 %v318
    %353 = vmatprep.subr.bf16.mxu0 0
    %354 = vmatpush1.bf16.msra.mxu0 %v319
    %355 = vmatprep.subr.bf16.mxu0 0
    %356 = vmatpush1.bf16.msra.mxu0 %v320
    %357 = vmatprep.subr.bf16.mxu0 0
    %358 = vmatpush1.bf16.msra.mxu0 %v321
    %359 = vmatprep.subr.bf16.mxu0 0
    %360 = vmatpush1.bf16.msra.mxu0 %v322
    %361 = vmatprep.subr.bf16.mxu0 0
    %362 = vmatpush1.bf16.msra.mxu0 %v323
    %363 = vmatprep.subr.bf16.mxu0 0
    %364 = vmatpush1.bf16.msra.mxu0 %v324
    %365 = vmatprep.subr.bf16.mxu0 0
    %366 = vmatpush1.bf16.msra.mxu0 %v325
    %367 = vmatprep.subr.bf16.mxu0 0
    %368 = vmatpush1.bf16.msra.mxu0 %v326
    %369 = vmatprep.subr.bf16.mxu0 0
    %370 = vmatpush1.bf16.msra.mxu0 %v327
    %371 = vmatprep.subr.bf16.mxu0 0
    %372 = vmatpush1.bf16.msra.mxu0 %v328
    %373 = vmatprep.subr.bf16.mxu0 0
    %374 = vmatpush1.bf16.msra.mxu0 %v329
    %375 = vmatprep.subr.bf16.mxu0 0
    %376 = vmatpush1.bf16.msra.mxu0 %v330
    %377 = vmatprep.subr.bf16.mxu0 0
    %378 = vmatpush1.bf16.msra.mxu0 %v331
    %379 = vmatprep.subr.bf16.mxu0 0
    %380 = vmatpush1.bf16.msra.mxu0 %v332
    %381 = vmatprep.mubr.bf16.mxu0 %v213
    %382 = vmatmul.mubr.bf16.gmra.mrb[0].mxu0 %v212
    %v383 = vpop.f32.mrb[0].mxu0
    %v384 = vadd.f32 %v251, %v383
    %v385 = vpop.f32.mrb[0].mxu0
    %v386 = vpop.f32.mrb[0].mxu0
    %v387 = vpop.f32.mrb[0].mxu0
    %388 = vdwg.mxu0
    %v389 = vmax.f32 %v384, 0.0
    %v390 = vld [vmem:[%s7] sm:$0x1]
    %v391 = vunpack.c.l.bf16 %v390
    %v392 = vlaneseq
    %v393 = vshrl.u32 %v392, 7
    %v394 = vsub.s32 0, %v393
    %v395 = vrot.slane %v391, %v394
    %v396 = vmul.f32 %v389, %v395
    %v397 = vsel %vm93, %v396, 0.0
    %398 = vadd.xlane.f32.xlu0 %v397
    %v399 = vpop.xlane.xlu0 %398
    %s400 = sld [smem:[#allocation2]]
    %v401 = vstv %s400
    %v402 = vadd.f32 %v399, %v401
    %vm403 = vcmask 1024
    %404 = vst.msk [vmem:[%s9] sm:$0x3] %vm403, %v402
    // Predicated region
    $region50: #{tpu_custom_call.1} parent=1 // pred_check
      _
    $region51: #{tpu_custom_call.1} parent=1 // pred_check_branch
      %406 = sbr.rel (0) target = $region53
    $region52: #{tpu_custom_call.1} parent=1 // pred_region
      _
    $region53: #{tpu_custom_call.1} parent=1 // pred_fallthru
      _
    // Predicated region
    $region54: #{tpu_custom_call.1} parent=1 // pred_check
      _
    $region55: #{tpu_custom_call.1} parent=1 // pred_check_branch
      %408 = sbr.rel (0) target = $region57
    $region56: #{tpu_custom_call.1} parent=1 // pred_region
      _
    $region57: #{tpu_custom_call.1} parent=1 // pred_fallthru
      _
    %409 = vsyncpa [#allocation4], 1
    %410 = vsyncpa [#allocation6], 1

</llo_original>
